<compile_context>
chip_gen: v5e
topology: v5e:2x2
jax: 0.10.0
libtpu: 0.0.40
codegen_flags: <defaults>
</compile_context>

<pallas_src>
import functools

import jax
import jax.numpy as jnp
import numpy as np
from jax.experimental import pallas as pl
from jax.experimental.pallas import tpu as pltpu

_TM = 256                       # row tile for the streamed adjacency (mult of 128)
_TK = 512                       # contraction tile (mult of 128)
_LANE = 128                     # lane width: embedding_dim padded up to this
_VMEM_LIMIT = 32 * 1024 * 1024  # fits v7x's 64 MiB physical VMEM with headroom


def _round_up(x, m):
    return ((x + m - 1) // m) * m


def _tiles_for(n):
    """Pick (n_pad, tm, tk) for an (n, n) adjacency streamed in (tm, tk) tiles."""
    if n <= _TK:
        # One full-extent block: exempt from the (8, 128) divisibility rule and
        # the pallas_call launch overhead dominates anyway at this size.
        return n, n, n
    n_pad = _round_up(n, _TK)   # divisible by both _TM and _TK
    return n_pad, _TM, _TK


def _adj_matmul_kernel(adj_ref, x_ref, out_ref, acc_ref):
    """One (row-tile, k-tile) step of out = adj @ x with f32 accumulation."""
    k = pl.program_id(1)

    @pl.when(k == 0)
    def _():
        acc_ref[...] = jnp.zeros_like(acc_ref)

    acc_ref[...] += jnp.dot(
        adj_ref[...],                           # bf16 (tm, tk) adjacency tile
        x_ref[...].astype(jnp.bfloat16),        # bf16 (tk, d_pad) activation
        preferred_element_type=jnp.float32,     # f32 accumulation on the MXU
    )

    @pl.when(k == pl.num_programs(1) - 1)
    def _():
        out_ref[...] = acc_ref[...]


def adj_matmul(adj, x, *, tm, tk):
    """Tiled dense `adj @ x` (bf16 adjacency, f32 activation, f32 result)."""
    m, kdim = adj.shape
    kdim2, d = x.shape
    assert kdim == kdim2, (adj.shape, x.shape)
    assert m % tm == 0 and kdim % tk == 0 and d % _LANE == 0

    return pl.pallas_call(
        _adj_matmul_kernel,
        out_shape=jax.ShapeDtypeStruct((m, d), jnp.float32),
        grid_spec=pltpu.PrefetchScalarGridSpec(
            num_scalar_prefetch=0,
            grid=(m // tm, kdim // tk),
            in_specs=[
                pl.BlockSpec((tm, tk), lambda i, k: (i, k)),   # streamed adjacency
                pl.BlockSpec((tk, d), lambda i, k: (k, 0)),    # activation slab
            ],
            out_specs=pl.BlockSpec((tm, d), lambda i, k: (i, 0)),
            scratch_shapes=[pltpu.VMEM((tm, d), jnp.float32)],
        ),
        compiler_params=pltpu.CompilerParams(
            dimension_semantics=("parallel", "arbitrary"),
            vmem_limit_bytes=_VMEM_LIMIT,
        ),
    )(adj, x)


class HCF:
    """JAX/Pallas re-implementation of the PyTorch HCF module (forward only)."""

    def __init__(self, n_users, n_items, embedding_dim, layer_num, dropout_list,
                 key=None):
        if key is None:
            key = jax.random.PRNGKey(50)
        self.n_users = n_users
        self.n_items = n_items
        self.embedding_dim = embedding_dim
        self.n_layers = layer_num
        self.dropout_list = dropout_list  # unused in deterministic forward
        ku, ki = jax.random.split(key)
        # xavier_uniform_: U(-b, b), b = sqrt(6 / (fan_in + fan_out))
        bu = float(np.sqrt(6.0 / (n_users + embedding_dim)))
        bi = float(np.sqrt(6.0 / (n_items + embedding_dim)))
        self.user_embedding = jax.random.uniform(
            ku, (n_users, embedding_dim), jnp.float32, -bu, bu)
        self.item_embedding = jax.random.uniform(
            ki, (n_items, embedding_dim), jnp.float32, -bi, bi)

    def forward(self, adj_u1, adj_u2, adj_i1, adj_i2, adj_cat):
        if self.n_users != self.n_items:
            # adj_cat multiplies both user- and item-side activations in the
            # original module, which forces n_users == n_items.
            raise ValueError("HCF requires n_users == n_items (shared adj_cat)")
        n = self.n_users
        d = self.embedding_dim
        d_pad = _round_up(d, _LANE)
        n_pad, tm, tk = _tiles_for(n)

        def pad_adj(a):
            a = jnp.asarray(a, jnp.float32)
            a = jnp.pad(a, ((0, n_pad - n), (0, n_pad - n)))
            return a.astype(jnp.bfloat16)        # HBM-bound: halve adjacency bytes

        au1, au2, ai1, ai2, ac = (
            pad_adj(adj_u1), pad_adj(adj_u2), pad_adj(adj_i1), pad_adj(adj_i2),
            pad_adj(adj_cat))

        def pad_emb(e):
            return jnp.pad(e, ((0, n_pad - n), (0, d_pad - d)))

        xu = pad_emb(self.user_embedding)        # (n_pad, d_pad) f32, lane-dense
        xi = pad_emb(self.item_embedding)
        acc_u = xu
        acc_i = xi

        mm = functools.partial(adj_matmul, tm=tm, tk=tk)
        for _ in range(self.n_layers):
            tu = mm(au1, mm(au2, xu))
            ti = mm(ai1, mm(ai2, xi))
            # Shared adj_cat stage fused across both branches: concatenate the
            # branch activations on the lane axis so adj_cat is streamed once.
            tc = mm(ac, jnp.concatenate([tu, ti], axis=1))
            xu = tc[:, :d_pad]
            xi = tc[:, d_pad:]
            # TODO(synk): nn.Dropout is identity in this deterministic forward.
            acc_u = acc_u + xu                   # f32 layer-mean accumulation
            acc_i = acc_i + xi

        inv = 1.0 / float(self.n_layers + 1)
        u_emb = (acc_u * inv)[:n, :d]
        i_emb = (acc_i * inv)[:n, :d]
        return u_emb, i_emb


def _reference_forward(model, adj_u1, adj_u2, adj_i1, adj_i2, adj_cat,
                       mixed_precision):
    """Pure-jnp reference mirroring the PyTorch forward (eval mode).

    With mixed_precision=True it mimics the kernel's numerics exactly
    (bf16 matmul operands, f32 accumulation); with False it is plain f32.
    """
    def mm(a, x):
        if mixed_precision:
            return jnp.dot(a.astype(jnp.bfloat16), x.astype(jnp.bfloat16),
                           preferred_element_type=jnp.float32)
        return jnp.dot(a, x, preferred_element_type=jnp.float32)

    def branch(adj2, adj1, adjc, h0, L):
        embs = [h0]
        for _ in range(L):
            t = mm(adj2, embs[-1])
            t = mm(adj1, t)
            embs.append(mm(adjc, t))
        return jnp.mean(jnp.stack(embs, axis=1), axis=1)

    u = branch(adj_u2, adj_u1, adj_cat, model.user_embedding, model.n_layers)
    i = branch(adj_i2, adj_i1, adj_cat, model.item_embedding, model.n_layers)
    return u, i


def _make_adj(key, n):
    """Sparse-ish dense adjacency with mild row normalization."""
    kv, km = jax.random.split(key)
    vals = jax.random.uniform(kv, (n, n), jnp.float32)
    mask = (jax.random.uniform(km, (n, n)) < 0.2).astype(jnp.float32)
    a = vals * mask
    row_sum = jnp.maximum(a.sum(axis=1, keepdims=True), 1.0)
    return a / row_sum


if __name__ == "__main__":
    # ---------- primary (small) test: single-block kernel path ----------
    n_users = 64
    n_items = 64
    embedding_dim = 32
    layer_num = 2
    dropout_list = [0.0, 0.0]

    key = jax.random.PRNGKey(0)
    k_model, k_u1, k_u2, k_i1, k_i2, k_cat = jax.random.split(key, 6)

    model = HCF(n_users, n_items, embedding_dim, layer_num, dropout_list,
                key=k_model)
    adj_u1 = _make_adj(k_u1, n_users)
    adj_u2 = _make_adj(k_u2, n_users)
    adj_i1 = _make_adj(k_i1, n_items)
    adj_i2 = _make_adj(k_i2, n_items)
    adj_cat = _make_adj(k_cat, n_users)

    u_emb, i_emb = model.forward(adj_u1, adj_u2, adj_i1, adj_i2, adj_cat)
    u_emb = jax.block_until_ready(u_emb)
    i_emb = jax.block_until_ready(i_emb)
    assert u_emb.shape == (n_users, embedding_dim)
    assert i_emb.shape == (n_items, embedding_dim)

    # Exact-numerics reference (bf16 operands, f32 accumulation): tight check.
    u_bf, i_bf = _reference_forward(model, adj_u1, adj_u2, adj_i1, adj_i2,
                                    adj_cat, mixed_precision=True)
    np.testing.assert_allclose(np.asarray(u_emb), np.asarray(u_bf),
                               rtol=1e-5, atol=1e-5)
    np.testing.assert_allclose(np.asarray(i_emb), np.asarray(i_bf),
                               rtol=1e-5, atol=1e-5)

    # Full-precision reference: loose check (bf16 adjacency quantization).
    u_f32, i_f32 = _reference_forward(model, adj_u1, adj_u2, adj_i1, adj_i2,
                                      adj_cat, mixed_precision=False)
    np.testing.assert_allclose(np.asarray(u_emb), np.asarray(u_f32),
                               rtol=5e-2, atol=5e-2)
    np.testing.assert_allclose(np.asarray(i_emb), np.asarray(i_f32),
                               rtol=5e-2, atol=5e-2)

    # ---------- secondary test: exercises the tiled + padded path ----------
    n2 = 640  # > _TK -> padded to 1024, streamed in (256, 512) bf16 tiles
    key2 = jax.random.PRNGKey(1)
    k2_model, k2_u1, k2_u2, k2_i1, k2_i2, k2_cat = jax.random.split(key2, 6)
    model2 = HCF(n2, n2, embedding_dim, layer_num, dropout_list, key=k2_model)
    a2_u1 = _make_adj(k2_u1, n2)
    a2_u2 = _make_adj(k2_u2, n2)
    a2_i1 = _make_adj(k2_i1, n2)
    a2_i2 = _make_adj(k2_i2, n2)
    a2_cat = _make_adj(k2_cat, n2)

    u2, i2 = model2.forward(a2_u1, a2_u2, a2_i1, a2_i2, a2_cat)
    u2 = jax.block_until_ready(u2)
    i2 = jax.block_until_ready(i2)
    assert u2.shape == (n2, embedding_dim) and i2.shape == (n2, embedding_dim)

    u2_ref, i2_ref = _reference_forward(model2, a2_u1, a2_u2, a2_i1, a2_i2,
                                        a2_cat, mixed_precision=True)
    np.testing.assert_allclose(np.asarray(u2), np.asarray(u2_ref),
                               rtol=1e-4, atol=1e-4)
    np.testing.assert_allclose(np.asarray(i2), np.asarray(i2_ref),
                               rtol=1e-4, atol=1e-4)

    print("KERNEL_OK")
</pallas_src>

<mosaic_0001>
module attributes {stable_mosaic.version = 11 : i64} {
  func.func @_adj_matmul_kernel(%arg0: i32, %arg1: i32, %arg2: memref<64x64xbf16, #tpu.memory_space<vmem>>, %arg3: memref<64x128xf32, #tpu.memory_space<vmem>>, %arg4: memref<64x128xf32, #tpu.memory_space<vmem>>, %arg5: memref<64x128xf32, #tpu.memory_space<vmem>>) attributes {dimension_semantics = [#tpu.dimension_semantics<parallel>, #tpu.dimension_semantics<arbitrary>], iteration_bounds = array<i64: 1, 1>, scalar_prefetch = 0 : i64, scratch_operands = 1 : i64, tpu.core_type = #tpu.core_type<tc>, window_params = [{transform_indices = @transform_0, window_bounds = array<i64: 64, 64>}, {transform_indices = @transform_1, window_bounds = array<i64: 64, 128>}, {transform_indices = @transform_2, window_bounds = array<i64: 64, 128>}]} {
    %c0_i32 = arith.constant 0 : i32
    %0 = arith.cmpi eq, %arg1, %c0_i32 : i32
    %1 = arith.extui %0 : i1 to i32
    %c0_i32_0 = arith.constant 0 : i32
    %2 = arith.cmpi ne, %1, %c0_i32_0 : i32
    scf.if %2 {
      %cst_10 = arith.constant 0.000000e+00 : f32
      %13 = vector.broadcast %cst_10 : f32 to vector<64x128xf32>
      %c0_11 = arith.constant 0 : index
      %c0_12 = arith.constant 0 : index
      %14 = vector.load %arg5[%c0_11, %c0_12] : memref<64x128xf32, #tpu.memory_space<vmem>>, vector<64x128xf32>
      tpu.vector_store %arg5[%c0_11, %c0_12], %13 {strides = array<i32>} : memref<64x128xf32, #tpu.memory_space<vmem>>, vector<64x128xf32>,
    } else {
    }
    %c0 = arith.constant 0 : index
    %c0_1 = arith.constant 0 : index
    %3 = vector.load %arg5[%c0, %c0_1] : memref<64x128xf32, #tpu.memory_space<vmem>>, vector<64x128xf32>
    %c0_2 = arith.constant 0 : index
    %c0_3 = arith.constant 0 : index
    %4 = vector.load %arg2[%c0_2, %c0_3] : memref<64x64xbf16, #tpu.memory_space<vmem>>, vector<64x64xbf16>
    %c0_4 = arith.constant 0 : index
    %c0_5 = arith.constant 0 : index
    %5 = vector.load %arg3[%c0_4, %c0_5] : memref<64x128xf32, #tpu.memory_space<vmem>>, vector<64x128xf32>
    %6 = arith.truncf %5 : vector<64x128xf32> to vector<64x128xbf16>
    %cst = arith.constant dense<0.000000e+00> : vector<64x128xf32>
    %7 = tpu.matmul %4, %6, %cst {dimension_numbers = #tpu.dot_dimension_numbers<[1], [0], [0], [1], [0, 0, 1, 1], [], []>} : vector<64x64xbf16>, vector<64x128xbf16>, vector<64x128xf32> -> vector<64x128xf32>
    %8 = arith.addf %3, %7 : vector<64x128xf32>
    %c0_6 = arith.constant 0 : index
    %c0_7 = arith.constant 0 : index
    %9 = vector.load %arg5[%c0_6, %c0_7] : memref<64x128xf32, #tpu.memory_space<vmem>>, vector<64x128xf32>
    tpu.vector_store %arg5[%c0_6, %c0_7], %8 {strides = array<i32>} : memref<64x128xf32, #tpu.memory_space<vmem>>, vector<64x128xf32>,
    %c0_i32_8 = arith.constant 0 : i32
    %10 = arith.cmpi eq, %arg1, %c0_i32_8 : i32
    %11 = arith.extui %10 : i1 to i32
    %c0_i32_9 = arith.constant 0 : i32
    %12 = arith.cmpi ne, %11, %c0_i32_9 : i32
    scf.if %12 {
      %c0_10 = arith.constant 0 : index
      %c0_11 = arith.constant 0 : index
      %13 = vector.load %arg5[%c0_10, %c0_11] : memref<64x128xf32, #tpu.memory_space<vmem>>, vector<64x128xf32>
      %c0_12 = arith.constant 0 : index
      %c0_13 = arith.constant 0 : index
      %14 = vector.load %arg4[%c0_12, %c0_13] : memref<64x128xf32, #tpu.memory_space<vmem>>, vector<64x128xf32>
      tpu.vector_store %arg4[%c0_12, %c0_13], %13 {strides = array<i32>} : memref<64x128xf32, #tpu.memory_space<vmem>>, vector<64x128xf32>,
    } else {
    }
    return
  }
  func.func @transform_0(%arg0: i32, %arg1: i32) -> (i32, i32) {
    %c0_i32 = arith.constant 0 : i32
    return %arg0, %arg1 : i32, i32
  }
  func.func @transform_1(%arg0: i32, %arg1: i32) -> (i32, i32) {
    %c0_i32 = arith.constant 0 : i32
    %c0_i32_0 = arith.constant 0 : i32
    return %arg1, %c0_i32 : i32, i32
  }
  func.func @transform_2(%arg0: i32, %arg1: i32) -> (i32, i32) {
    %c0_i32 = arith.constant 0 : i32
    %c0_i32_0 = arith.constant 0 : i32
    return %arg0, %c0_i32 : i32, i32
  }
}

</mosaic_0001>

<llo_original>
// kernel: tpu_custom_call.1
$region0: #{tpu_custom_call.1}
  #allocation0 [shape = 'u32[]', space=smem, size = 0x4, offset = 0x4, fixed_abs, tag = 'smem constant byte address 0x4 - core index']
  #allocation1 [shape = 'u32[72,128]{1,0:T(1,128)}', space=vmem, size = 0x9000, scoped, tag = 'internal scratch']
  #allocation2 [shape = 'f32[64,128]{1,0:T(8,128)}', space=vmem, size = 0x8000, scoped, tag = 'scratch operand']
  %s0 = inlined_call_operand.hbm [shape: bf16[64,64], index: 0, kind: input, shape index: {}]
  %s1 = inlined_call_operand.hbm [shape: f32[64,128], index: 1, kind: input, shape index: {}]
  %s2 = inlined_call_operand.hbm [shape: f32[64,128], index: 2, kind: output, shape index: {}]
  %s3 = sld [smem:[#allocation0]]
  $region34: #{tpu_custom_call.1} parent=0
    _
  %s5 = ssub.s32 1, %s3
  %s6 = scalar_select 0, %s5, %s3
  $region1: #{tpu_custom_call.1} parent=0
    #allocation3 [shape = 'u8[16384]{0}', space=vmem, size = 0x4000, scoped, tag = 'input window, operand 0, single buffered']
    #allocation4 [shape = 's32[1]{0}', space=sflag, size = 0x4, scoped, tag = 'scoped memory for tpu_custom_call.1']
    #allocation5 [shape = 's32[1]{0}', space=sflag, size = 0x4, scoped, tag = 'scoped memory for tpu_custom_call.1']
    #allocation6 [shape = 'u8[32768]{0}', space=vmem, size = 0x8000, scoped, tag = 'input window, operand 1, single buffered']
    #allocation7 [shape = 's32[1]{0}', space=sflag, size = 0x4, scoped, tag = 'scoped memory for tpu_custom_call.1']
    #allocation8 [shape = 'u8[32768]{0}', space=vmem, size = 0x8000, scoped, tag = 'output window, operand 0, single buffered']
    %7 = vsyncpa [#allocation4], 0
    %8 = vsyncpa [#allocation7], 0
    %9 = vsyncpa [#allocation5], 0
    // Predicated region
    $region2: #{tpu_custom_call.1} parent=1 // pred_check
      _
    $region3: #{tpu_custom_call.1} parent=1 // pred_check_branch
      %11 = sbr.rel (0) target = $region5
    $region4: #{tpu_custom_call.1} parent=1 // pred_region
      %13 = vsyncadd [#allocation4], 0
      %s14 = sshll.u32 %s0, 4
      %s15 = int_to_ptr.hbm [resolvable:$true] %s14
      %s16 = sshll.u32 [#allocation3], 4
      %s17 = int_to_ptr.vmem [resolvable:$true] %s16
      %22 = dma.hbm_to_vmem [thread:$0]  %s15, 512, %s17, [#allocation4], 64, 64, 4
    $region5: #{tpu_custom_call.1} parent=1 // pred_fallthru
      _
    // Predicated region
    $region6: #{tpu_custom_call.1} parent=1 // pred_check
      _
    $region7: #{tpu_custom_call.1} parent=1 // pred_check_branch
      %24 = sbr.rel (0) target = $region9
    $region8: #{tpu_custom_call.1} parent=1 // pred_region
      %26 = vsyncadd [#allocation7], 0
      %s27 = sshll.u32 %s1, 4
      %s28 = int_to_ptr.hbm [resolvable:$true] %s27
      %s29 = sshll.u32 [#allocation6], 4
      %s30 = int_to_ptr.vmem [resolvable:$true] %s29
      %35 = dma.hbm_to_vmem [thread:$0]  %s28, 1024, %s30, [#allocation7], 128, 128, 8
    $region9: #{tpu_custom_call.1} parent=1 // pred_fallthru
      _
    // Predicated region
    $region10: #{tpu_custom_call.1} parent=1 // pred_check
      _
    $region11: #{tpu_custom_call.1} parent=1 // pred_check_branch
      %37 = sbr.rel (0) target = $region13
    $region12: #{tpu_custom_call.1} parent=1 // pred_region
      %39 = dma.done [#allocation4], 512
    $region13: #{tpu_custom_call.1} parent=1 // pred_fallthru
      _
    // Predicated region
    $region14: #{tpu_custom_call.1} parent=1 // pred_check
      _
    $region15: #{tpu_custom_call.1} parent=1 // pred_check_branch
      %41 = sbr.rel (0) target = $region17
    $region16: #{tpu_custom_call.1} parent=1 // pred_region
      %43 = dma.done [#allocation7], 1024
    $region17: #{tpu_custom_call.1} parent=1 // pred_fallthru
      _
    %p45 = scmp.eq.s32.totalorder 0, 0
    // Predicated region
    $region18: #{tpu_custom_call.1} parent=1 // pred_check
      %p46 = pneg %p45
    $region19: #{tpu_custom_call.1} parent=1 // pred_check_branch
      %48 = sbr.rel (%p46) target = $region21
    $region20: #{tpu_custom_call.1} parent=1 // pred_region
      %49 = vst [vmem:[#allocation2] sm:$0xff] 0.0
      %50 = vst [vmem:[#allocation2 + $0x8] sm:$0xff] 0.0
      %51 = vst [vmem:[#allocation2 + $0x10] sm:$0xff] 0.0
      %52 = vst [vmem:[#allocation2 + $0x18] sm:$0xff] 0.0
      %53 = vst [vmem:[#allocation2 + $0x20] sm:$0xff] 0.0
      %54 = vst [vmem:[#allocation2 + $0x28] sm:$0xff] 0.0
      %55 = vst [vmem:[#allocation2 + $0x30] sm:$0xff] 0.0
      %56 = vst [vmem:[#allocation2 + $0x38] sm:$0xff] 0.0
    $region21: #{tpu_custom_call.1} parent=1 // pred_fallthru
      _
    %v57 = vld [vmem:[#allocation2] sm:$0xff]
    %v58 = vld [vmem:[#allocation2 + $0x8] sm:$0xff]
    %v59 = vld [vmem:[#allocation2 + $0x10] sm:$0xff]
    %v60 = vld [vmem:[#allocation2 + $0x18] sm:$0xff]
    %v61 = vld [vmem:[#allocation2 + $0x20] sm:$0xff]
    %v62 = vld [vmem:[#allocation2 + $0x28] sm:$0xff]
    %v63 = vld [vmem:[#allocation2 + $0x30] sm:$0xff]
    %v64 = vld [vmem:[#allocation2 + $0x38] sm:$0xff]
    %v65 = vld [vmem:[#allocation3] sm:$0xf]
    %v66 = vld [vmem:[#allocation3 + $0x4] sm:$0xf]
    %v67 = vld [vmem:[#allocation3 + $0x8] sm:$0xf]
    %v68 = vld [vmem:[#allocation3 + $0xc] sm:$0xf]
    %v69 = vld [vmem:[#allocation3 + $0x10] sm:$0xf]
    %v70 = vld [vmem:[#allocation3 + $0x14] sm:$0xf]
    %v71 = vld [vmem:[#allocation3 + $0x18] sm:$0xf]
    %v72 = vld [vmem:[#allocation3 + $0x1c] sm:$0xf]
    %v73 = vld [vmem:[#allocation6] sm:$0xff]
    %v74 = vld [vmem:[#allocation6 + $0x8] sm:$0xff]
    %v75 = vld [vmem:[#allocation6 + $0x10] sm:$0xff]
    %v76 = vld [vmem:[#allocation6 + $0x18] sm:$0xff]
    %v77 = vld [vmem:[#allocation6 + $0x20] sm:$0xff]
    %v78 = vld [vmem:[#allocation6 + $0x28] sm:$0xff]
    %v79 = vld [vmem:[#allocation6 + $0x30] sm:$0xff]
    %v80 = vld [vmem:[#allocation6 + $0x38] sm:$0xff]
    %v81 = vpack.c.bf16 %v74, %v73
    %v82 = vpack.c.bf16 %v76, %v75
    %v83 = vpack.c.bf16 %v78, %v77
    %v84 = vpack.c.bf16 %v80, %v79
    %v93 = vunpack.c.l.b16 %v65
    %v94 = vunpack.c.l.b16 %v66
    %v95 = vunpack.c.l.b16 %v67
    %v96 = vunpack.c.l.b16 %v68
    %v97 = vunpack.c.l.b16 %v69
    %v98 = vunpack.c.l.b16 %v70
    %v99 = vunpack.c.l.b16 %v71
    %v100 = vunpack.c.l.b16 %v72
    %v101 = vpack.c.b16 %v94, %v93
    %v102 = vpack.c.b16 %v96, %v95
    %v103 = vpack.c.b16 %v98, %v97
    %v104 = vpack.c.b16 %v100, %v99
    %vm105 = vcmask 523264
    %v107 = vsel %vm105, %v101, 0
    %v110 = vsel %vm105, %v102, 0
    %v113 = vsel %vm105, %v103, 0
    %v116 = vsel %vm105, %v104, 0
    %118 = vmatpush.bf16.msra.mxu0 0
    %119 = vmatpush.bf16.msra.mxu0 0
    %120 = vmatpush.bf16.msra.mxu0 0
    %121 = vmatpush.bf16.msra.mxu0 0
    %122 = vmatpush.bf16.msra.mxu0 %v84
    %123 = vmatpush.bf16.msra.mxu0 %v83
    %124 = vmatpush.bf16.msra.mxu0 %v82
    %125 = vmatpush.bf16.msra.mxu0 %v81
    %126 = vmatmul.bf16.gmra.mxu0 %v107
    %v127 = vpop.f32.mrf.mxu0
    %v128 = vadd.f32 0.0, %v127
    %v129 = vpop.f32.mrf.mxu0
    %v130 = vadd.f32 0.0, %v129
    %131 = vmatmul.bf16.gmra.mxu0 %v110
    %v132 = vpop.f32.mrf.mxu0
    %v133 = vadd.f32 0.0, %v132
    %v134 = vpop.f32.mrf.mxu0
    %v135 = vadd.f32 0.0, %v134
    %136 = vmatmul.bf16.gmra.mxu0 %v113
    %v137 = vpop.f32.mrf.mxu0
    %v138 = vadd.f32 0.0, %v137
    %v139 = vpop.f32.mrf.mxu0
    %v140 = vadd.f32 0.0, %v139
    %141 = vmatmul.bf16.gmra.mxu0 %v116
    %v142 = vpop.f32.mrf.mxu0
    %v143 = vadd.f32 0.0, %v142
    %v144 = vpop.f32.mrf.mxu0
    %v145 = vadd.f32 0.0, %v144
    %146 = vdwg.mxu0
    %v147 = vadd.f32 %v57, %v128
    %v148 = vadd.f32 %v58, %v130
    %v149 = vadd.f32 %v59, %v133
    %v150 = vadd.f32 %v60, %v135
    %v151 = vadd.f32 %v61, %v138
    %v152 = vadd.f32 %v62, %v140
    %v153 = vadd.f32 %v63, %v143
    %v154 = vadd.f32 %v64, %v145
    %155 = vst [vmem:[#allocation2] sm:$0xff] %v147
    %156 = vst [vmem:[#allocation2 + $0x8] sm:$0xff] %v148
    %157 = vst [vmem:[#allocation2 + $0x10] sm:$0xff] %v149
    %158 = vst [vmem:[#allocation2 + $0x18] sm:$0xff] %v150
    %159 = vst [vmem:[#allocation2 + $0x20] sm:$0xff] %v151
    %160 = vst [vmem:[#allocation2 + $0x28] sm:$0xff] %v152
    %161 = vst [vmem:[#allocation2 + $0x30] sm:$0xff] %v153
    %162 = vst [vmem:[#allocation2 + $0x38] sm:$0xff] %v154
    // Predicated region
    $region22: #{tpu_custom_call.1} parent=1 // pred_check
      %p163 = pneg %p45
    $region23: #{tpu_custom_call.1} parent=1 // pred_check_branch
      %165 = sbr.rel (%p163) target = $region25
    $region24: #{tpu_custom_call.1} parent=1 // pred_region
      %v166 = vld [vmem:[#allocation2] sm:$0xff]
      %v167 = vld [vmem:[#allocation2 + $0x8] sm:$0xff]
      %v168 = vld [vmem:[#allocation2 + $0x10] sm:$0xff]
      %v169 = vld [vmem:[#allocation2 + $0x18] sm:$0xff]
      %v170 = vld [vmem:[#allocation2 + $0x20] sm:$0xff]
      %v171 = vld [vmem:[#allocation2 + $0x28] sm:$0xff]
      %v172 = vld [vmem:[#allocation2 + $0x30] sm:$0xff]
      %v173 = vld [vmem:[#allocation2 + $0x38] sm:$0xff]
      %174 = vst [vmem:[#allocation8] sm:$0xff] %v166
      %175 = vst [vmem:[#allocation8 + $0x8] sm:$0xff] %v167
      %176 = vst [vmem:[#allocation8 + $0x10] sm:$0xff] %v168
      %177 = vst [vmem:[#allocation8 + $0x18] sm:$0xff] %v169
      %178 = vst [vmem:[#allocation8 + $0x20] sm:$0xff] %v170
      %179 = vst [vmem:[#allocation8 + $0x28] sm:$0xff] %v171
      %180 = vst [vmem:[#allocation8 + $0x30] sm:$0xff] %v172
      %181 = vst [vmem:[#allocation8 + $0x38] sm:$0xff] %v173
    $region25: #{tpu_custom_call.1} parent=1 // pred_fallthru
      _
    // Predicated region
    $region26: #{tpu_custom_call.1} parent=1 // pred_check
      _
    $region27: #{tpu_custom_call.1} parent=1 // pred_check_branch
      %183 = sbr.rel (0) target = $region29
    $region28: #{tpu_custom_call.1} parent=1 // pred_region
      %185 = vsyncadd [#allocation5], 0
      %s186 = sshll.u32 [#allocation8], 4
      %s187 = int_to_ptr.vmem [resolvable:$true] %s186
      %s188 = sshll.u32 %s2, 4
      %s189 = int_to_ptr.hbm [resolvable:$true] %s188
      %194 = dma.vmem_to_hbm [thread:$0]  %s187, 1024, %s189, [#allocation5], 128, 128, 8
    $region29: #{tpu_custom_call.1} parent=1 // pred_fallthru
      _
    // Predicated region
    $region30: #{tpu_custom_call.1} parent=1 // pred_check
      _
    $region31: #{tpu_custom_call.1} parent=1 // pred_check_branch
      %196 = sbr.rel (0) target = $region33
    $region32: #{tpu_custom_call.1} parent=1 // pred_region
      %198 = dma.done [#allocation5], 1024
    $region33: #{tpu_custom_call.1} parent=1 // pred_fallthru
      _
    %199 = vsyncpa [#allocation4], 1
    %200 = vsyncpa [#allocation7], 1
    %201 = vsyncpa [#allocation5], 1

</llo_original>
